<compile_context>
chip_gen: v6e
topology: v6e:2x2x1
jax: 0.10.0
libtpu: 0.0.40
codegen_flags: <defaults>
</compile_context>

<pallas_src>
import functools

import jax
import jax.numpy as jnp
from jax.experimental import pallas as pl
from jax.experimental.pallas import tpu as pltpu


F32_TILE_BUDGET_BYTES = 2 * 1024 * 1024    # base (bt, th, w) f32 tile; ~8x this lives in VMEM
VMEM_LIMIT_BYTES = 48 * 1024 * 1024        # < v7x's 64 MiB physical; plenty of room on v5e/v6e
MIN_GRID_STEPS = 4                         # aim for >= this many grid steps when batch allows


def _largest_divisor_leq(n, cap):
    cap = max(1, min(n, cap))
    for d in range(cap, 0, -1):
        if n % d == 0:
            return d
    return 1


def _row_tile(h, max_rows):
    """Row tile: a multiple of 8, <= max_rows, preferring an exact divisor of h."""
    max_th = max(8, min((max_rows // 8) * 8, ((h + 7) // 8) * 8))
    d = max_th
    while d >= max(8, max_th // 2):
        if h % d == 0:
            return d
        d -= 8
    return max_th   # no big-enough divisor: pl.cdiv grid + in-kernel row mask


def _choose_tiles(n, h, w):
    """Pick (batch_tile, row_tile, num_row_tiles) from a VMEM byte budget."""
    rows_budget = max(8, F32_TILE_BUDGET_BYTES // (4 * w))
    if h <= rows_budget:
        th, n_rb = h, 1
        bt_cap = max(1, rows_budget // h)
        if n >= 2:
            # Keep >= MIN_GRID_STEPS grid steps (megacore + pipelining) when possible.
            bt_cap = min(bt_cap, max(1, n // MIN_GRID_STEPS))
        bt = _largest_divisor_leq(n, bt_cap)
        if n // bt == 1 and h >= 16 and h % 16 == 0:
            # Single grid step otherwise: split rows so v7x's two TensorCores get work.
            th, n_rb = h // 2, 2
    else:
        bt = 1
        th = _row_tile(h, rows_budget)
        n_rb = -(-h // th)
    return bt, th, n_rb


def _sobel_phase_body(x_ref, top_ref, bot_ref, o_ref, total_rows):
    """Separable Sobel + atan2 on one (bt, th, w) tile.

    top_ref / bot_ref are (bt, 8, w) views whose row 7 / row 0 hold the 1-row conv
    halo of interior row tiles (None when the tile spans all image rows)."""
    bt, th, w = o_ref.shape
    f32 = jnp.float32

    # Cast on the VMEM tile; the DMA moved the original (possibly narrower) dtype.
    xf = x_ref[...].astype(f32)

    if total_rows % th != 0:
        # Last row tile is partially out of bounds: zero the invalid rows so the
        # image-bottom boundary condition stays correct (their stores are masked).
        row = jax.lax.broadcasted_iota(jnp.int32, (bt, th, w), 1) + pl.program_id(1) * th
        xf = jnp.where(row < total_rows, xf, 0.0)

    if top_ref is None:
        top = jnp.zeros((bt, 1, w), f32)
        bot = jnp.zeros((bt, 1, w), f32)
    else:
        r = pl.program_id(1)
        nr = pl.num_programs(1)
        # Zero at the image top/bottom (Conv2d padding=1), neighbour row otherwise.
        top = top_ref[:, 7:8, :].astype(f32) * (r > 0).astype(f32)
        bot = bot_ref[:, 0:1, :].astype(f32) * (r < nr - 1).astype(f32)

    xe = jnp.concatenate([top, xf, bot], axis=1)            # (bt, th + 2, w)

    # Column taps with a zero left/right boundary column (padding=1 semantics).
    zc = jnp.zeros((bt, th + 2, 1), f32)
    xl = jnp.concatenate([zc, xe[:, :, : w - 1]], axis=2)   # x[..., j - 1]
    xr = jnp.concatenate([xe[:, :, 1:], zc], axis=2)        # x[..., j + 1]

    # Separable Sobel (cross-correlation, matching Conv2d):
    #   gx kernel [[1,0,-1],[2,0,-2],[1,0,-1]] = rows [1,2,1] (x) cols [1,0,-1]
    #   gy kernel = its transpose              = rows [1,0,-1] (x) cols [1,2,1]
    d = xl - xr                      # [1, 0, -1] across columns
    s = xl + 2.0 * xe + xr           # [1, 2, 1]  across columns
    gx = d[:, 0:th, :] + 2.0 * d[:, 1:th + 1, :] + d[:, 2:th + 2, :]
    gy = s[:, 0:th, :] - s[:, 2:th + 2, :]

    o_ref[...] = jnp.arctan2(gx, gy)


def _fused_kernel(x_ref, o_ref, *, total_rows):
    _sobel_phase_body(x_ref, None, None, o_ref, total_rows)


def _row_tiled_kernel(x_ref, top_ref, bot_ref, o_ref, *, total_rows):
    _sobel_phase_body(x_ref, top_ref, bot_ref, o_ref, total_rows)


@jax.jit
def hog_layer_phase(x):
    """x: (N, 1, H, W). Returns phase = atan2(gx, gy), shape (N, H, W) float32."""
    n, c, h, w = x.shape
    if c != 1:
        raise ValueError("HOGLayer conv expects a single input channel")

    x2d = x.reshape(n, h, w)                 # metadata-only; keep the original dtype
    bt, th, n_rb = _choose_tiles(n, h, w)

    io_spec = pl.BlockSpec((bt, th, w), lambda b, r: (b, r, 0))
    in_specs = [io_spec]
    args = [x2d]

    if n_rb > 1:
        # Two extra auto-pipelined 8-row views of the same input supply the 1-row
        # top/bottom conv halo of interior tiles (row 7 / row 0 of the band).
        # Index maps are clamped; the clamped (image-boundary) cases are zeroed
        # inside the kernel.
        thb = th // 8                        # th is always a multiple of 8 here
        nb8 = -(-h // 8)
        in_specs.append(
            pl.BlockSpec((bt, 8, w), lambda b, r: (b, jnp.maximum(r * thb - 1, 0), 0)))
        in_specs.append(
            pl.BlockSpec((bt, 8, w), lambda b, r: (b, jnp.minimum((r + 1) * thb, nb8 - 1), 0)))
        args += [x2d, x2d]
        kernel = functools.partial(_row_tiled_kernel, total_rows=h)
    else:
        kernel = functools.partial(_fused_kernel, total_rows=h)

    return pl.pallas_call(
        kernel,
        out_shape=jax.ShapeDtypeStruct((n, h, w), jnp.float32),
        grid=(n // bt, n_rb),
        in_specs=in_specs,
        out_specs=io_spec,
        compiler_params=pltpu.CompilerParams(
            dimension_semantics=("parallel", "parallel"),
            vmem_limit_bytes=VMEM_LIMIT_BYTES,
        ),
    )(*args)


def _reference(x):
    """Pure-JAX mirror of the PyTorch forward (returns phase and gradient magnitude)."""
    x2d = x[:, 0, :, :].astype(jnp.float32)
    xp = jnp.pad(x2d, ((0, 0), (1, 1), (1, 1)))
    h, w = x2d.shape[1], x2d.shape[2]
    tl = xp[:, 0:h, 0:w]
    tc = xp[:, 0:h, 1:w + 1]
    tr = xp[:, 0:h, 2:w + 2]
    ml = xp[:, 1:h + 1, 0:w]
    mr = xp[:, 1:h + 1, 2:w + 2]
    bl = xp[:, 2:h + 2, 0:w]
    bc = xp[:, 2:h + 2, 1:w + 1]
    br = xp[:, 2:h + 2, 2:w + 2]
    gx = tl - tr + 2.0 * ml - 2.0 * mr + bl - br
    gy = tl + 2.0 * tc + tr - bl - 2.0 * bc - br
    return jnp.arctan2(gx, gy), jnp.hypot(gx, gy)


def _check(x):
    phase = jax.block_until_ready(hog_layer_phase(x))
    ref_phase, ref_mag = _reference(x)
    assert phase.shape == ref_phase.shape
    assert phase.dtype == jnp.float32
    # Angle-aware comparison (atan2 wraps at +/- pi); pixels with a near-zero
    # gradient magnitude are numerically ill-conditioned for atan2, so exempt them.
    err = jnp.abs(phase - ref_phase)
    err = jnp.minimum(err, 2.0 * jnp.pi - err)
    ok = (err < 2e-3) | (ref_mag < 3e-2)
    assert bool(jnp.all(ok)), f"max angular error {float(jnp.max(err))}"


if __name__ == "__main__":
    # Primary shape consistent with the module: N=2, C=1, H=W=16 (batch-fused path).
    x = jax.random.normal(jax.random.PRNGKey(0), (2, 1, 16, 16), dtype=jnp.float32)
    _check(x)

    # N=1 forces the 2-way row split (exercises the halo-band path on a tiny image).
    _check(jax.random.normal(jax.random.PRNGKey(1), (1, 1, 16, 16), dtype=jnp.float32))

    # Tall image: exercises VMEM-budget row tiling with overlapping halo bands.
    _check(jax.random.normal(jax.random.PRNGKey(2), (1, 1, 2176, 256), dtype=jnp.float32))

    print("KERNEL_OK")
</pallas_src>

<mosaic_0001>
module attributes {stable_mosaic.version = 11 : i64} {
  func.func @_fused_kernel(%arg0: i32, %arg1: i32, %arg2: memref<1x16x16xf32, #tpu.memory_space<vmem>>, %arg3: memref<1x16x16xf32, #tpu.memory_space<vmem>>) attributes {dimension_semantics = [#tpu.dimension_semantics<parallel>, #tpu.dimension_semantics<parallel>], iteration_bounds = array<i64: 2, 1>, scalar_prefetch = 0 : i64, scratch_operands = 0 : i64, tpu.core_type = #tpu.core_type<tc>, window_params = [{transform_indices = @transform_0, window_bounds = array<i64: 1, 16, 16>}, {transform_indices = @transform_1, window_bounds = array<i64: 1, 16, 16>}]} {
    %c0 = arith.constant 0 : index
    %c0_0 = arith.constant 0 : index
    %c0_1 = arith.constant 0 : index
    %0 = vector.load %arg2[%c0, %c0_0, %c0_1] : memref<1x16x16xf32, #tpu.memory_space<vmem>>, vector<1x16x16xf32>
    %cst = arith.constant 0.000000e+00 : f32
    %1 = vector.broadcast %cst : f32 to vector<1x1x16xf32>
    %cst_2 = arith.constant 0.000000e+00 : f32
    %2 = vector.broadcast %cst_2 : f32 to vector<1x1x16xf32>
    %3 = tpu.concatenate %1, %0, %2 in 1 : vector<1x1x16xf32>, vector<1x16x16xf32>, vector<1x1x16xf32> -> vector<1x18x16xf32>
    %cst_3 = arith.constant 0.000000e+00 : f32
    %4 = vector.broadcast %cst_3 : f32 to vector<1x18x1xf32>
    %5 = vector.extract_strided_slice %3 {offsets = [0, 0, 0], sizes = [1, 18, 15], strides = [1, 1, 1]} : vector<1x18x16xf32> to vector<1x18x15xf32>
    %6 = tpu.concatenate %4, %5 in 2 : vector<1x18x1xf32>, vector<1x18x15xf32> -> vector<1x18x16xf32>
    %7 = vector.extract_strided_slice %3 {offsets = [0, 0, 1], sizes = [1, 18, 15], strides = [1, 1, 1]} : vector<1x18x16xf32> to vector<1x18x15xf32>
    %8 = tpu.concatenate %7, %4 in 2 : vector<1x18x15xf32>, vector<1x18x1xf32> -> vector<1x18x16xf32>
    %9 = arith.subf %6, %8 : vector<1x18x16xf32>
    %cst_4 = arith.constant 2.000000e+00 : f32
    %10 = vector.broadcast %cst_4 : f32 to vector<1x18x16xf32>
    %11 = arith.mulf %10, %3 : vector<1x18x16xf32>
    %12 = arith.addf %6, %11 : vector<1x18x16xf32>
    %13 = arith.addf %12, %8 : vector<1x18x16xf32>
    %14 = vector.extract_strided_slice %9 {offsets = [0, 0, 0], sizes = [1, 16, 16], strides = [1, 1, 1]} : vector<1x18x16xf32> to vector<1x16x16xf32>
    %15 = vector.extract_strided_slice %9 {offsets = [0, 1, 0], sizes = [1, 16, 16], strides = [1, 1, 1]} : vector<1x18x16xf32> to vector<1x16x16xf32>
    %cst_5 = arith.constant 2.000000e+00 : f32
    %16 = vector.broadcast %cst_5 : f32 to vector<1x16x16xf32>
    %17 = arith.mulf %16, %15 : vector<1x16x16xf32>
    %18 = arith.addf %14, %17 : vector<1x16x16xf32>
    %19 = vector.extract_strided_slice %9 {offsets = [0, 2, 0], sizes = [1, 16, 16], strides = [1, 1, 1]} : vector<1x18x16xf32> to vector<1x16x16xf32>
    %20 = arith.addf %18, %19 : vector<1x16x16xf32>
    %21 = vector.extract_strided_slice %13 {offsets = [0, 0, 0], sizes = [1, 16, 16], strides = [1, 1, 1]} : vector<1x18x16xf32> to vector<1x16x16xf32>
    %22 = vector.extract_strided_slice %13 {offsets = [0, 2, 0], sizes = [1, 16, 16], strides = [1, 1, 1]} : vector<1x18x16xf32> to vector<1x16x16xf32>
    %23 = arith.subf %21, %22 : vector<1x16x16xf32>
    %24 = math.atan2 %20, %23 : vector<1x16x16xf32>
    %c0_6 = arith.constant 0 : index
    %c0_7 = arith.constant 0 : index
    %c0_8 = arith.constant 0 : index
    %25 = vector.load %arg3[%c0_6, %c0_7, %c0_8] : memref<1x16x16xf32, #tpu.memory_space<vmem>>, vector<1x16x16xf32>
    tpu.vector_store %arg3[%c0_6, %c0_7, %c0_8], %24 {strides = array<i32>} : memref<1x16x16xf32, #tpu.memory_space<vmem>>, vector<1x16x16xf32>,
    return
  }
  func.func @transform_0(%arg0: i32, %arg1: i32) -> (i32, i32, i32) {
    %c0_i32 = arith.constant 0 : i32
    %c0_i32_0 = arith.constant 0 : i32
    return %arg0, %arg1, %c0_i32 : i32, i32, i32
  }
  func.func @transform_1(%arg0: i32, %arg1: i32) -> (i32, i32, i32) {
    %c0_i32 = arith.constant 0 : i32
    %c0_i32_0 = arith.constant 0 : i32
    return %arg0, %arg1, %c0_i32 : i32, i32, i32
  }
}

</mosaic_0001>

<llo_original>
// kernel: hog_layer_phase.1
$region0: #{hog_layer_phase.1}
  #allocation0 [shape = 'u32[]', space=smem, size = 0x4, offset = 0x4, fixed_abs, tag = 'smem constant byte address 0x4 - core index']
  #allocation1 [shape = 'u32[144,128]{1,0:T(1,128)}', space=vmem, size = 0x12000, scoped, tag = 'internal scratch']
  %s0 = inlined_call_operand.hbm [shape: f32[2,16,16], index: 0, kind: input, shape index: {}]
  %s1 = inlined_call_operand.hbm [shape: f32[2,16,16], index: 1, kind: output, shape index: {}]
  %s2 = sld [smem:[#allocation0]]
  $region41: #{hog_layer_phase.1} parent=0
    _
  %s4 = ssub.s32 1, %s2
  %s5 = scalar_select 0, %s4, %s2
  $region1: #{hog_layer_phase.1} parent=0
    #allocation2 [shape = 'u8[16384]{0}', space=vmem, size = 0x4000, scoped, tag = 'input window, operand 0']
    #allocation3 [shape = 's32[2]{0}', space=sflag, size = 0x8, scoped, tag = 'scoped memory for hog_layer_phase.1']
    #allocation4 [shape = 's32[2]{0}', space=sflag, size = 0x8, scoped, tag = 'scoped memory for hog_layer_phase.1']
    #allocation5 [shape = 'u8[16384]{0}', space=vmem, size = 0x4000, scoped, tag = 'output window, operand 0']
    %6 = vsyncpa [#allocation3], 0
    %s7 = scalar_lea.sflag [#allocation3], 1
    %8 = vsyncpa %s7, 0
    %9 = vsyncpa [#allocation4], 0
    %s10 = scalar_lea.sflag [#allocation4], 1
    %11 = vsyncpa %s10, 0
    loop: start=0, step=1, limit=4
    $region2: #{hog_layer_phase.1} parent=1 // loop_pre_header
      _
    $region3: #{hog_layer_phase.1} parent=1 // loop_header
      %s13 = sphi 0, %s17
      %p14 = scmp.ge.s32.totalorder %s13, 4
      %s20 = sphi 0, %s32
      %s21 = sphi 0, %s28
      %s22 = sphi 0, %s20
      %s23 = sphi 0, %s21
      %s24 = sphi 0, %s22
      %s25 = sphi 0, %s23
      %s37 = sphi 0, %s39
      %s40 = sphi 0, %s37
      %s41 = sphi 0, %s40
      %s57 = sphi 0, %s41
      %s65 = sphi 0, %s67
      %s68 = sphi 0, %s65
      %s69 = sphi 0, %s68
      %s85 = sphi 0, %s69
    $region4: #{hog_layer_phase.1} parent=1 // loop_header_branch
      %16 = sbr.rel (%p14) target = $region8
    $region5: #{hog_layer_phase.1} parent=1 // loop_body
      %s18 = ssub.s32 %s13, 1
      %s19 = ssub.s32 %s13, 2
      %s26 = sadd.s32 1, %s21
      %p27 = scmp.ge.s32.totalorder %s26, 1
      %s28 = scalar_select %p27, 0, %s26
      %s29 = sadd.s32 1, %s20
      %s30 = scalar_select %p27, %s29, %s20
      %p31 = scmp.ge.s32.totalorder %s30, 2
      %s32 = scalar_select %p31, 0, %s30
      %s33 = ssub.s32 %s20, %s32
      %s34 = ssub.s32 %s21, %s28
      %s35 = sor.u32 %s33, %s34
      %p36 = scmp.eq.s32.totalorder %s35, 0
      %s38 = sadd.s32 %s37, 1
      %s39 = scalar_select %p36, %s37, %s38
      %p42 = pneg %p36
      %p43 = scmp.eq.s32.totalorder %s13, 1
      %p44 = por %p42, %p43
      %p45 = scmp.ne.s32.totalorder %s37, %s40
      %p46 = scmp.eq.s32.totalorder %s13, 0
      %p47 = por %p45, %p46
      %p48 = scmp.ne.s32.totalorder %s37, %s40
      %p49 = scmp.eq.s32.totalorder %s18, 1
      %p50 = por %p48, %p49
      %p51 = scmp.ne.s32.totalorder %s40, %s41
      %p52 = scmp.eq.s32.totalorder %s18, 0
      %p53 = por %p51, %p52
      %p54 = scmp.ne.s32.totalorder %s40, %s41
      %p55 = scmp.eq.s32.totalorder %s19, 1
      %p56 = por %p54, %p55
      %p58 = scmp.ne.s32.totalorder %s41, %s57
      %p59 = scmp.eq.s32.totalorder %s19, 0
      %p60 = por %p58, %p59
      %s61 = ssub.s32 %s20, %s32
      %s62 = ssub.s32 %s21, %s28
      %s63 = sor.u32 %s61, %s62
      %p64 = scmp.eq.s32.totalorder %s63, 0
      %s66 = sadd.s32 %s65, 1
      %s67 = scalar_select %p64, %s65, %s66
      %p70 = pneg %p64
      %p71 = scmp.eq.s32.totalorder %s13, 1
      %p72 = por %p70, %p71
      %p73 = scmp.ne.s32.totalorder %s65, %s68
      %p74 = scmp.eq.s32.totalorder %s13, 0
      %p75 = por %p73, %p74
      %p76 = scmp.ne.s32.totalorder %s65, %s68
      %p77 = scmp.eq.s32.totalorder %s18, 1
      %p78 = por %p76, %p77
      %p79 = scmp.ne.s32.totalorder %s68, %s69
      %p80 = scmp.eq.s32.totalorder %s18, 0
      %p81 = por %p79, %p80
      %p82 = scmp.ne.s32.totalorder %s68, %s69
      %p83 = scmp.eq.s32.totalorder %s19, 1
      %p84 = por %p82, %p83
      %p86 = scmp.ne.s32.totalorder %s69, %s85
      %p87 = scmp.eq.s32.totalorder %s19, 0
      %p88 = por %p86, %p87
      %p89 = scmp.le.s32.totalorder 1, %s13
      %p90 = scmp.lt.s32.totalorder %s13, 3
      %p91 = pnand %p89, %p90
      %p92 = pneg %p91
      // Predicated region
      $region9: #{hog_layer_phase.1} parent=5 // pred_check
        _
      $region10: #{hog_layer_phase.1} parent=5 // pred_check_branch
        %94 = sbr.rel (%p91) target = $region12
      $region11: #{hog_layer_phase.1} parent=5 // pred_region
        %s95 = ssub.s32 %s13, 1
      $region12: #{hog_layer_phase.1} parent=5 // pred_fallthru
        _
      %p96 = scmp.lt.s32.totalorder %s13, 2
      // Predicated region
      $region13: #{hog_layer_phase.1} parent=5 // pred_check
        %p97 = pneg %p96
      $region14: #{hog_layer_phase.1} parent=5 // pred_check_branch
        %99 = sbr.rel (%p97) target = $region16
      $region15: #{hog_layer_phase.1} parent=5 // pred_region
        // Predicated region
        $region17: #{hog_layer_phase.1} parent=15 // pred_check
          %p100 = pneg %p47
        $region18: #{hog_layer_phase.1} parent=15 // pred_check_branch
          %102 = sbr.rel (%p100) target = $region20
        $region19: #{hog_layer_phase.1} parent=15 // pred_region
          %s103 = sand.u32 %s37, 1
          %s104 = scalar_lea.sflag [#allocation3], %s103
          %s105 = sand.u32 %s37, 1
          %s106 = smul.addr %s105, 16
          %s107 = scalar_lea.vmem [#allocation2], %s106
          %s108 = smul.u32 2, %s21
          %s110 = ssub.s32 256, 256
          %111 = vsyncadd %s104, %s110
          %s112 = smul.addr %s20, 2
          %s113 = sadd.s32 %s108, %s112
          %s114 = smul.addr %s113, 128
          %s115 = scalar_lea.hbm %s0, %s114
          %s116 = sshll.u32 %s107, 4
          %s117 = int_to_ptr.vmem [resolvable:$true] %s116
          %122 = dma.hbm_to_vmem [thread:$0]  %s115, 256, %s117, %s104, 128, 128, 8
        $region20: #{hog_layer_phase.1} parent=15 // pred_fallthru
          _
      $region16: #{hog_layer_phase.1} parent=5 // pred_fallthru
        _
      %p123 = scmp.le.s32.totalorder 1, %s13
      %p124 = scmp.lt.s32.totalorder %s13, 3
      %p125 = pnand %p123, %p124
      %p126 = pneg %p125
      // Predicated region
      $region21: #{hog_layer_phase.1} parent=5 // pred_check
        _
      $region22: #{hog_layer_phase.1} parent=5 // pred_check_branch
        %128 = sbr.rel (%p125) target = $region24
      $region23: #{hog_layer_phase.1} parent=5 // pred_region
        %s129 = ssub.s32 %s13, 1
        %s130 = sand.u32 %s40, 1
        %s131 = scalar_lea.sflag [#allocation3], %s130
        %s132 = sand.u32 %s40, 1
        %s133 = smul.addr %s132, 16
        %s134 = scalar_lea.vmem [#allocation2], %s133
        // Predicated region
        $region25: #{hog_layer_phase.1} parent=23 // pred_check
          %p135 = pneg %p53
        $region26: #{hog_layer_phase.1} parent=23 // pred_check_branch
          %137 = sbr.rel (%p135) target = $region28
        $region27: #{hog_layer_phase.1} parent=23 // pred_region
          %138 = dma.done %s131, 256
        $region28: #{hog_layer_phase.1} parent=23 // pred_fallthru
          _
        %s139 = sand.u32 %s40, 1
        %s140 = scalar_lea.sflag [#allocation3], %s139
        %s141 = sand.u32 %s40, 1
        %s142 = smul.addr %s141, 16
        %s143 = scalar_lea.vmem [#allocation2], %s142
        %p144 = pneg %p53
        %p145 = pneg %p50
        %p146 = pneg %p81
        %p147 = pneg %p78
        %s148 = sand.u32 %s68, 1
        %s149 = scalar_lea.sflag [#allocation4], %s148
        %s150 = sand.u32 %s68, 1
        %s151 = smul.addr %s150, 16
        %s152 = scalar_lea.vmem [#allocation5], %s151
        %s153 = smul.u32 2, %s23
        %s154 = smul.u32 2, %s23
        %v155 = vld [vmem:[%s134] sm:$0xff]
        %v156 = vld [vmem:[%s134 + $0x8] sm:$0xff]
        %vm159 = vcmask 1040384
        %v160 = vrot.slane %v155, 7
        %v161 = vrot.slane %v156, 7
        %v162 = vsel %vm159, %v160, %v161
        %v166 = vsel %vm159, 0.0, %v160
        %v167 = vsel %vm159, %v161, 0.0
        %170 = vrot.lane.b32.xlu0 %v166, 1
        %v171 = vpop.permute.xlu0 %170
        %172 = vrot.lane.b32.xlu0 %v162, 1
        %v173 = vpop.permute.xlu0 %172
        %174 = vrot.lane.b32.xlu0 %v167, 1
        %v175 = vpop.permute.xlu0 %174
        %vm179 = vcmask 7168
        %v180 = vsel %vm179, 0.0, %v171
        %v181 = vsel %vm179, 0.0, %v173
        %v182 = vsel %vm179, 0.0, %v175
        %183 = vrot.lane.b32.xlu0 %v166, 127
        %v184 = vpop.permute.xlu0 %183
        %185 = vrot.lane.b32.xlu0 %v162, 127
        %v186 = vpop.permute.xlu0 %185
        %187 = vrot.lane.b32.xlu0 %v167, 127
        %v188 = vpop.permute.xlu0 %187
        %vm192 = vcmask 121856
        %v193 = vsel %vm192, %v184, 0.0
        %v194 = vsel %vm192, %v186, 0.0
        %v195 = vsel %vm192, %v188, 0.0
        %v196 = vsub.f32 %v180, %v193
        %v197 = vsub.f32 %v181, %v194
        %v198 = vsub.f32 %v182, %v195
        %v199 = vmul.f32 %v166, 2.0
        %v200 = vmul.f32 %v162, 2.0
        %v201 = vmul.f32 %v167, 2.0
        %v202 = vadd.f32 %v180, %v199
        %v203 = vadd.f32 %v181, %v200
        %v204 = vadd.f32 %v182, %v201
        %v205 = vadd.f32 %v202, %v193
        %v206 = vadd.f32 %v203, %v194
        %v207 = vadd.f32 %v204, %v195
        %v208 = vmul.f32 %v196, 2.0
        %v209 = vmul.f32 %v197, 2.0
        %v210 = vmul.f32 %v198, 2.0
        %vm214 = vcmask 1046528
        %v215 = vrot.slane %v208, 1
        %v216 = vrot.slane %v209, 1
        %v217 = vsel %vm214, %v215, %v216
        %v218 = vrot.slane %v210, 1
        %v219 = vsel %vm214, %v216, %v218
        %v222 = vadd.f32 %v196, %v217
        %v223 = vadd.f32 %v197, %v219
        %vm227 = vcmask 1045504
        %v228 = vrot.slane %v196, 2
        %v229 = vrot.slane %v197, 2
        %v230 = vsel %vm227, %v228, %v229
        %v231 = vrot.slane %v198, 2
        %v232 = vsel %vm227, %v229, %v231
        %v235 = vadd.f32 %v222, %v230
        %v236 = vadd.f32 %v223, %v232
        %v240 = vrot.slane %v205, 2
        %v241 = vrot.slane %v206, 2
        %v242 = vsel %vm227, %v240, %v241
        %v243 = vrot.slane %v207, 2
        %v244 = vsel %vm227, %v241, %v243
        %v247 = vsub.f32 %v205, %v242
        %v248 = vsub.f32 %v206, %v244
        %v249 = vand.u32 2147483647, %v247
        %v250 = vand.u32 2147483647, %v235
        %v251 = vmin.f32 %v249, %v250
        %v252 = vmax.f32 %v249, %v250
        %v253 = vrcp.pop %v252
        %v254 = vmul.f32 %v251, %v253
        %v255 = vmul.f32 %v254, %v254
        %v256 = vmul.f32 0.002785687, %v255
        %v257 = vadd.f32 %v256, -0.015866
        %v258 = vmul.f32 %v257, %v255
        %v259 = vadd.f32 %v258, 0.04247222
        %v260 = vmul.f32 %v259, %v255
        %v261 = vadd.f32 %v260, -0.074975304
        %v262 = vmul.f32 %v261, %v255
        %v263 = vadd.f32 %v262, 0.1064488
        %v264 = vmul.f32 %v263, %v255
        %v265 = vadd.f32 %v264, -0.14207031
        %v266 = vmul.f32 %v265, %v255
        %v267 = vadd.f32 %v266, 0.19993454
        %v268 = vmul.f32 %v267, %v255
        %v269 = vadd.f32 %v268, -0.33333147
        %v270 = vmul.f32 %v269, %v255
        %v271 = vmul.f32 %v270, %v254
        %v272 = vadd.f32 %v271, %v254
        %vm273 = vcmp.gt.f32.partialorder %v250, %v249
        %v274 = vsub.f32 1.5707964, %v272
        %v275 = vsel %vm273, %v274, %v272
        %vm276 = vcmp.lt.f32.partialorder %v247, 0.0
        %v277 = vsub.f32 3.1415927, %v275
        %v278 = vsel %vm276, %v277, %v275
        %vm279 = vcmp.lt.s32.totalorder %v247, 0
        %v280 = vsel %vm279, 3.1415927, 0.0
        %vm281 = vcmp.eq.f32.partialorder %v235, 0.0
        %v282 = vsel %vm281, %v280, %v278
        %vm283 = vcmp.ne.f32.partialorder %v247, %v247
        %vm284 = vcmp.ne.f32.partialorder %v235, %v235
        %vm285 = vmor %vm283, %vm284
        %v286 = vsel %vm285, nan, %v282
        %vm287 = vcmp.lt.f32.partialorder %v247, 0.0
        %v288 = vsel %vm287, 2.3561945, 0.7853982
        %vm289 = vcmp.eq.s32.totalorder %v249, inf
        %vm290 = vcmp.eq.s32.totalorder %v250, inf
        %vm291 = vmand %vm289, %vm290
        %v292 = vsel %vm291, %v288, %v286
        %v293 = vand.u32 2147483647, %v292
        %v294 = vand.u32 %v235, 2147483648
        %v295 = vor.u32 %v293, %v294
        %v296 = vand.u32 2147483647, %v248
        %v297 = vand.u32 2147483647, %v236
        %v298 = vmin.f32 %v296, %v297
        %v299 = vmax.f32 %v296, %v297
        %v300 = vrcp.pop %v299
        %v301 = vmul.f32 %v298, %v300
        %v302 = vmul.f32 %v301, %v301
        %v303 = vmul.f32 0.002785687, %v302
        %v304 = vadd.f32 %v303, -0.015866
        %v305 = vmul.f32 %v304, %v302
        %v306 = vadd.f32 %v305, 0.04247222
        %v307 = vmul.f32 %v306, %v302
        %v308 = vadd.f32 %v307, -0.074975304
        %v309 = vmul.f32 %v308, %v302
        %v310 = vadd.f32 %v309, 0.1064488
        %v311 = vmul.f32 %v310, %v302
        %v312 = vadd.f32 %v311, -0.14207031
        %v313 = vmul.f32 %v312, %v302
        %v314 = vadd.f32 %v313, 0.19993454
        %v315 = vmul.f32 %v314, %v302
        %v316 = vadd.f32 %v315, -0.33333147
        %v317 = vmul.f32 %v316, %v302
        %v318 = vmul.f32 %v317, %v301
        %v319 = vadd.f32 %v318, %v301
        %vm320 = vcmp.gt.f32.partialorder %v297, %v296
        %v321 = vsub.f32 1.5707964, %v319
        %v322 = vsel %vm320, %v321, %v319
        %vm323 = vcmp.lt.f32.partialorder %v248, 0.0
        %v324 = vsub.f32 3.1415927, %v322
        %v325 = vsel %vm323, %v324, %v322
        %vm326 = vcmp.lt.s32.totalorder %v248, 0
        %v327 = vsel %vm326, 3.1415927, 0.0
        %vm328 = vcmp.eq.f32.partialorder %v236, 0.0
        %v329 = vsel %vm328, %v327, %v325
        %vm330 = vcmp.ne.f32.partialorder %v248, %v248
        %vm331 = vcmp.ne.f32.partialorder %v236, %v236
        %vm332 = vmor %vm330, %vm331
        %v333 = vsel %vm332, nan, %v329
        %vm334 = vcmp.lt.f32.partialorder %v248, 0.0
        %v335 = vsel %vm334, 2.3561945, 0.7853982
        %vm336 = vcmp.eq.s32.totalorder %v296, inf
        %vm337 = vcmp.eq.s32.totalorder %v297, inf
        %vm338 = vmand %vm336, %vm337
        %v339 = vsel %vm338, %v335, %v333
        %v340 = vand.u32 2147483647, %v339
        %v341 = vand.u32 %v236, 2147483648
        %v342 = vor.u32 %v340, %v341
        %vm343 = vcmask 130048
        %344 = vst.msk [vmem:[%s152] sm:$0xff] %vm343, %v295
        %345 = vst.msk [vmem:[%s152 + $0x8] sm:$0xff] %vm343, %v342
        %s346 = sand.u32 %s68, 1
        %s347 = scalar_lea.sflag [#allocation4], %s346
        %s348 = sand.u32 %s68, 1
        %s349 = smul.addr %s348, 16
        %s350 = scalar_lea.vmem [#allocation5], %s349
        // Predicated region
        $region29: #{hog_layer_phase.1} parent=23 // pred_check
          %p351 = pneg %p78
        $region30: #{hog_layer_phase.1} parent=23 // pred_check_branch
          %353 = sbr.rel (%p351) target = $region32
        $region31: #{hog_layer_phase.1} parent=23 // pred_region
          %s354 = smul.u32 2, %s23
          %s356 = ssub.s32 256, 256
          %357 = vsyncadd %s347, %s356
          %s358 = smul.addr %s22, 2
          %s359 = sadd.s32 %s354, %s358
          %s360 = smul.addr %s359, 128
          %s361 = scalar_lea.hbm %s1, %s360
          %s362 = sshll.u32 %s350, 4
          %s363 = int_to_ptr.vmem [resolvable:$true] %s362
          %368 = dma.vmem_to_hbm [thread:$0]  %s363, 256, %s361, %s347, 128, 128, 8
        $region32: #{hog_layer_phase.1} parent=23 // pred_fallthru
          _
      $region24: #{hog_layer_phase.1} parent=5 // pred_fallthru
        _
      %p369 = scmp.le.s32.totalorder 2, %s13
      // Predicated region
      $region33: #{hog_layer_phase.1} parent=5 // pred_check
        %p370 = pneg %p369
      $region34: #{hog_layer_phase.1} parent=5 // pred_check_branch
        %372 = sbr.rel (%p370) target = $region36
      $region35: #{hog_layer_phase.1} parent=5 // pred_region
        %s373 = ssub.s32 %s13, 2
        // Predicated region
        $region37: #{hog_layer_phase.1} parent=35 // pred_check
          %p374 = pneg %p84
        $region38: #{hog_layer_phase.1} parent=35 // pred_check_branch
          %376 = sbr.rel (%p374) target = $region40
        $region39: #{hog_layer_phase.1} parent=35 // pred_region
          %s377 = sand.u32 %s69, 1
          %s378 = scalar_lea.sflag [#allocation4], %s377
          %s379 = sand.u32 %s69, 1
          %s380 = smul.addr %s379, 16
          %s381 = scalar_lea.vmem [#allocation5], %s380
          %382 = dma.done %s378, 256
        $region40: #{hog_layer_phase.1} parent=35 // pred_fallthru
          _
      $region36: #{hog_layer_phase.1} parent=5 // pred_fallthru
        _
    $region6: #{hog_layer_phase.1} parent=1 // loop_footer
      %s17 = sadd.s32 1, %s13
    $region7: #{hog_layer_phase.1} parent=1 // loop_footer_branch
      %12 = sbr.rel target = $region3
    $region8: #{hog_layer_phase.1} parent=1 // loop_exit
      _
    %383 = vsyncpa [#allocation3], 1
    %s384 = scalar_lea.sflag [#allocation3], 1
    %385 = vsyncpa %s384, 1
    %386 = vsyncpa [#allocation4], 1
    %s387 = scalar_lea.sflag [#allocation4], 1
    %388 = vsyncpa %s387, 1

</llo_original>
